<compile_context>
chip_gen: v7x
topology: tpu7x:2x2x1
jax: 0.10.0
libtpu: 0.0.40
codegen_flags: <defaults>
</compile_context>

<pallas_src>
import math

import jax
import jax.numpy as jnp
from jax.experimental import pallas as pl
from jax.experimental.pallas import tpu as pltpu


def mlp_kernel(xT_ref, w1_ref, b1_ref, w2_ref, b2_ref, w3_ref, b3_ref, oT_ref):
    xT = xT_ref[...]                      # (in_dim, T)
    w1 = w1_ref[...]                      # (H, in_dim)
    in_dim = xT.shape[0]
    hid = w1.shape[0]
    t = xT.shape[1]

    # ---- layer 1: K = in_dim (tiny) -> VPU broadcast-MAC, skip the MXU ----
    acc = jnp.zeros((hid, t), jnp.float32)
    for k in range(in_dim):               # static unroll (in_dim is small)
        acc = acc + w1[:, k:k + 1] * xT[k:k + 1, :]
    h1 = jnp.maximum(acc + b1_ref[...], 0.0)            # (H, T)

    # ---- layer 2: (H, H) @ (H, T) on the MXU, lane-dense output ----
    h2 = jnp.dot(w2_ref[...], h1, preferred_element_type=jnp.float32) + b2_ref[...]
    h2 = jnp.maximum(h2, 0.0)                            # (H, T)

    # ---- layer 3: (out, H) @ (H, T) ----
    logits = jnp.dot(w3_ref[...], h2, preferred_element_type=jnp.float32) + b3_ref[...]

    # ---- numerically-stable log_softmax over the class axis (axis 0 here) ----
    m = jnp.max(logits, axis=0, keepdims=True)
    shifted = logits - m
    lse = jnp.log(jnp.sum(jnp.exp(shifted), axis=0, keepdims=True))
    oT_ref[...] = (shifted - lse).astype(oT_ref.dtype)


def classifier_mlp_forward(x, params, tile_n=2048):
    """x: (N, in_dim) float32.  params: W* in torch (out,in) layout, b* as (out,1)."""
    w1, b1 = params["W1"], params["b1"]   # (H, in),  (H, 1)
    w2, b2 = params["W2"], params["b2"]   # (H, H),   (H, 1)
    w3, b3 = params["W3"], params["b3"]   # (O, H),   (O, 1)

    n, in_dim = x.shape
    hid = w1.shape[0]
    out_dim = w3.shape[0]

    # Batch goes on lanes; prefer multiples of 128, fall back to full N when small.
    tile = tile_n if n > tile_n else n
    grid = (pl.cdiv(n, tile),)

    xT = x.T                              # (in_dim, N) — wrapper-side layout plumbing

    const = lambda shp: pl.BlockSpec(shp, lambda i: (0, 0))

    cost = pl.CostEstimate(
        flops=2 * n * (in_dim * hid + hid * hid + hid * out_dim),
        transcendentals=n * out_dim,
        bytes_accessed=4 * (n * in_dim + n * out_dim
                            + hid * in_dim + hid * hid + out_dim * hid
                            + 2 * hid + out_dim),
    )

    outT = pl.pallas_call(
        mlp_kernel,
        out_shape=jax.ShapeDtypeStruct((out_dim, n), jnp.float32),
        grid=grid,
        in_specs=[
            pl.BlockSpec((in_dim, tile), lambda i: (0, i)),   # x^T, tiled over batch
            const(w1.shape), const(b1.shape),                 # weights/biases resident
            const(w2.shape), const(b2.shape),
            const(w3.shape), const(b3.shape),
        ],
        out_specs=pl.BlockSpec((out_dim, tile), lambda i: (0, i)),
        compiler_params=pltpu.CompilerParams(
            dimension_semantics=("parallel",),                # 2-TC split on v7x
        ),
        cost_estimate=cost,
    )(xT, w1, b1, w2, b2, w3, b3)

    return outT.T                          # back to (N, out_dim)


def init_params(key, in_dim, hidden_dim, out_dim):
    """torch.nn.Linear default init: U(-1/sqrt(fan_in), 1/sqrt(fan_in)); torch (out,in) layout."""
    keys = jax.random.split(key, 6)

    def linear(kw, kb, fan_in, fan_out):
        bound = 1.0 / math.sqrt(fan_in)
        w = jax.random.uniform(kw, (fan_out, fan_in), jnp.float32, -bound, bound)
        b = jax.random.uniform(kb, (fan_out, 1), jnp.float32, -bound, bound)
        return w, b

    w1, b1 = linear(keys[0], keys[1], in_dim, hidden_dim)
    w2, b2 = linear(keys[2], keys[3], hidden_dim, hidden_dim)
    w3, b3 = linear(keys[4], keys[5], hidden_dim, out_dim)
    return {"W1": w1, "b1": b1, "W2": w2, "b2": b2, "W3": w3, "b3": b3}


def reference_forward(x, params):
    h1 = jnp.maximum(x @ params["W1"].T + params["b1"].T, 0.0)
    h2 = jnp.maximum(h1 @ params["W2"].T + params["b2"].T, 0.0)
    logits = h2 @ params["W3"].T + params["b3"].T
    return jax.nn.log_softmax(logits, axis=-1)


if __name__ == "__main__":
    # The surrounding code reshapes inputs to (-1, 2), so in_dim = 2.
    in_dim, hidden_dim, out_dim = 2, 32, 4

    key = jax.random.PRNGKey(0)
    kx, kp, kx2 = jax.random.split(key, 3)
    params = init_params(kp, in_dim, hidden_dim, out_dim)

    # Small test (matches the module's example usage).
    batch = 8
    x = jax.random.normal(kx, (batch * in_dim,), jnp.float32).reshape(-1, in_dim)
    out = jax.block_until_ready(classifier_mlp_forward(x, params))
    ref = reference_forward(x, params)
    assert out.shape == (batch, out_dim)
    assert jnp.allclose(out, ref, atol=1e-5, rtol=1e-5), "mismatch vs reference (small)"

    # Larger test exercising the batch grid + a partial (non-multiple) last tile.
    batch2 = 1000
    x2 = jax.random.normal(kx2, (batch2, in_dim), jnp.float32)
    out2 = jax.block_until_ready(classifier_mlp_forward(x2, params, tile_n=256))
    ref2 = reference_forward(x2, params)
    assert out2.shape == (batch2, out_dim)
    assert jnp.allclose(out2, ref2, atol=1e-5, rtol=1e-5), "mismatch vs reference (tiled)"

    print("KERNEL_OK")
</pallas_src>

<mosaic_0001>
module attributes {stable_mosaic.version = 11 : i64} {
  func.func @mlp_kernel(%arg0: i32, %arg1: memref<2x8xf32, #tpu.memory_space<vmem>>, %arg2: memref<32x2xf32, #tpu.memory_space<vmem>>, %arg3: memref<32x1xf32, #tpu.memory_space<vmem>>, %arg4: memref<32x32xf32, #tpu.memory_space<vmem>>, %arg5: memref<32x1xf32, #tpu.memory_space<vmem>>, %arg6: memref<4x32xf32, #tpu.memory_space<vmem>>, %arg7: memref<4x1xf32, #tpu.memory_space<vmem>>, %arg8: memref<4x8xf32, #tpu.memory_space<vmem>>) attributes {dimension_semantics = [#tpu.dimension_semantics<parallel>], iteration_bounds = array<i64: 1>, scalar_prefetch = 0 : i64, scratch_operands = 0 : i64, tpu.core_type = #tpu.core_type<tc>, window_params = [{transform_indices = @transform_0, window_bounds = array<i64: 2, 8>}, {pipeline_mode = #tpu.pipeline_mode<synchronous>, transform_indices = @transform_1, window_bounds = array<i64: 32, 2>}, {pipeline_mode = #tpu.pipeline_mode<synchronous>, transform_indices = @transform_2, window_bounds = array<i64: 32, 1>}, {pipeline_mode = #tpu.pipeline_mode<synchronous>, transform_indices = @transform_3, window_bounds = array<i64: 32, 32>}, {pipeline_mode = #tpu.pipeline_mode<synchronous>, transform_indices = @transform_4, window_bounds = array<i64: 32, 1>}, {pipeline_mode = #tpu.pipeline_mode<synchronous>, transform_indices = @transform_5, window_bounds = array<i64: 4, 32>}, {pipeline_mode = #tpu.pipeline_mode<synchronous>, transform_indices = @transform_6, window_bounds = array<i64: 4, 1>}, {transform_indices = @transform_7, window_bounds = array<i64: 4, 8>}]} {
    %c0 = arith.constant 0 : index
    %c0_0 = arith.constant 0 : index
    %0 = vector.load %arg1[%c0, %c0_0] : memref<2x8xf32, #tpu.memory_space<vmem>>, vector<2x8xf32>
    %c0_1 = arith.constant 0 : index
    %c0_2 = arith.constant 0 : index
    %1 = vector.load %arg2[%c0_1, %c0_2] : memref<32x2xf32, #tpu.memory_space<vmem>>, vector<32x2xf32>
    %cst = arith.constant 0.000000e+00 : f32
    %2 = vector.broadcast %cst : f32 to vector<32x8xf32>
    %3 = vector.extract_strided_slice %1 {offsets = [0, 0], sizes = [32, 1], strides = [1, 1]} : vector<32x2xf32> to vector<32x1xf32>
    %4 = vector.extract_strided_slice %0 {offsets = [0, 0], sizes = [1, 8], strides = [1, 1]} : vector<2x8xf32> to vector<1x8xf32>
    %5 = vector.broadcast %3 : vector<32x1xf32> to vector<32x8xf32>
    %6 = vector.broadcast %4 : vector<1x8xf32> to vector<32x8xf32>
    %7 = arith.mulf %5, %6 : vector<32x8xf32>
    %8 = arith.addf %2, %7 : vector<32x8xf32>
    %9 = vector.extract_strided_slice %1 {offsets = [0, 1], sizes = [32, 1], strides = [1, 1]} : vector<32x2xf32> to vector<32x1xf32>
    %10 = vector.extract_strided_slice %0 {offsets = [1, 0], sizes = [1, 8], strides = [1, 1]} : vector<2x8xf32> to vector<1x8xf32>
    %11 = vector.broadcast %9 : vector<32x1xf32> to vector<32x8xf32>
    %12 = vector.broadcast %10 : vector<1x8xf32> to vector<32x8xf32>
    %13 = arith.mulf %11, %12 : vector<32x8xf32>
    %14 = arith.addf %8, %13 : vector<32x8xf32>
    %c0_3 = arith.constant 0 : index
    %c0_4 = arith.constant 0 : index
    %15 = vector.load %arg3[%c0_3, %c0_4] : memref<32x1xf32, #tpu.memory_space<vmem>>, vector<32x1xf32>
    %16 = vector.broadcast %15 : vector<32x1xf32> to vector<32x8xf32>
    %17 = arith.addf %14, %16 : vector<32x8xf32>
    %cst_5 = arith.constant 0.000000e+00 : f32
    %18 = vector.broadcast %cst_5 : f32 to vector<32x8xf32>
    %19 = arith.maximumf %17, %18 : vector<32x8xf32>
    %c0_6 = arith.constant 0 : index
    %c0_7 = arith.constant 0 : index
    %20 = vector.load %arg4[%c0_6, %c0_7] : memref<32x32xf32, #tpu.memory_space<vmem>>, vector<32x32xf32>
    %cst_8 = arith.constant dense<0.000000e+00> : vector<32x8xf32>
    %21 = tpu.matmul %20, %19, %cst_8 {dimension_numbers = #tpu.dot_dimension_numbers<[1], [0], [0], [1], [0, 0, 1, 1], [], []>} : vector<32x32xf32>, vector<32x8xf32>, vector<32x8xf32> -> vector<32x8xf32>
    %c0_9 = arith.constant 0 : index
    %c0_10 = arith.constant 0 : index
    %22 = vector.load %arg5[%c0_9, %c0_10] : memref<32x1xf32, #tpu.memory_space<vmem>>, vector<32x1xf32>
    %23 = vector.broadcast %22 : vector<32x1xf32> to vector<32x8xf32>
    %24 = arith.addf %21, %23 : vector<32x8xf32>
    %cst_11 = arith.constant 0.000000e+00 : f32
    %25 = vector.broadcast %cst_11 : f32 to vector<32x8xf32>
    %26 = arith.maximumf %24, %25 : vector<32x8xf32>
    %c0_12 = arith.constant 0 : index
    %c0_13 = arith.constant 0 : index
    %27 = vector.load %arg6[%c0_12, %c0_13] : memref<4x32xf32, #tpu.memory_space<vmem>>, vector<4x32xf32>
    %cst_14 = arith.constant dense<0.000000e+00> : vector<4x8xf32>
    %28 = tpu.matmul %27, %26, %cst_14 {dimension_numbers = #tpu.dot_dimension_numbers<[1], [0], [0], [1], [0, 0, 1, 1], [], []>} : vector<4x32xf32>, vector<32x8xf32>, vector<4x8xf32> -> vector<4x8xf32>
    %c0_15 = arith.constant 0 : index
    %c0_16 = arith.constant 0 : index
    %29 = vector.load %arg7[%c0_15, %c0_16] : memref<4x1xf32, #tpu.memory_space<vmem>>, vector<4x1xf32>
    %30 = vector.broadcast %29 : vector<4x1xf32> to vector<4x8xf32>
    %31 = arith.addf %28, %30 : vector<4x8xf32>
    %cst_17 = arith.constant dense<0xFF800000> : vector<8xf32>
    %32 = vector.multi_reduction <maximumf>, %31, %cst_17 [0] : vector<4x8xf32> to vector<8xf32>
    %33 = vector.shape_cast %32 : vector<8xf32> to vector<1x8xf32>
    %34 = vector.broadcast %33 : vector<1x8xf32> to vector<4x8xf32>
    %35 = arith.subf %31, %34 : vector<4x8xf32>
    %36 = math.exp %35 : vector<4x8xf32>
    %cst_18 = arith.constant dense<0.000000e+00> : vector<8xf32>
    %37 = vector.multi_reduction <add>, %36, %cst_18 [0] : vector<4x8xf32> to vector<8xf32>
    %38 = vector.shape_cast %37 : vector<8xf32> to vector<1x8xf32>
    %39 = math.log %38 : vector<1x8xf32>
    %40 = vector.broadcast %39 : vector<1x8xf32> to vector<4x8xf32>
    %41 = arith.subf %35, %40 : vector<4x8xf32>
    %c0_19 = arith.constant 0 : index
    %c0_20 = arith.constant 0 : index
    %42 = vector.load %arg8[%c0_19, %c0_20] : memref<4x8xf32, #tpu.memory_space<vmem>>, vector<4x8xf32>
    tpu.vector_store %arg8[%c0_19, %c0_20], %41 {strides = array<i32>} : memref<4x8xf32, #tpu.memory_space<vmem>>, vector<4x8xf32>,
    return
  }
  func.func @transform_0(%arg0: i32) -> (i32, i32) {
    %c0_i32 = arith.constant 0 : i32
    %c0_i32_0 = arith.constant 0 : i32
    return %c0_i32, %arg0 : i32, i32
  }
  func.func @transform_1(%arg0: i32) -> (i32, i32) {
    %c0_i32 = arith.constant 0 : i32
    %c0_i32_0 = arith.constant 0 : i32
    %c0_i32_1 = arith.constant 0 : i32
    return %c0_i32, %c0_i32_0 : i32, i32
  }
  func.func @transform_2(%arg0: i32) -> (i32, i32) {
    %c0_i32 = arith.constant 0 : i32
    %c0_i32_0 = arith.constant 0 : i32
    %c0_i32_1 = arith.constant 0 : i32
    return %c0_i32, %c0_i32_0 : i32, i32
  }
  func.func @transform_3(%arg0: i32) -> (i32, i32) {
    %c0_i32 = arith.constant 0 : i32
    %c0_i32_0 = arith.constant 0 : i32
    %c0_i32_1 = arith.constant 0 : i32
    return %c0_i32, %c0_i32_0 : i32, i32
  }
  func.func @transform_4(%arg0: i32) -> (i32, i32) {
    %c0_i32 = arith.constant 0 : i32
    %c0_i32_0 = arith.constant 0 : i32
    %c0_i32_1 = arith.constant 0 : i32
    return %c0_i32, %c0_i32_0 : i32, i32
  }
  func.func @transform_5(%arg0: i32) -> (i32, i32) {
    %c0_i32 = arith.constant 0 : i32
    %c0_i32_0 = arith.constant 0 : i32
    %c0_i32_1 = arith.constant 0 : i32
    return %c0_i32, %c0_i32_0 : i32, i32
  }
  func.func @transform_6(%arg0: i32) -> (i32, i32) {
    %c0_i32 = arith.constant 0 : i32
    %c0_i32_0 = arith.constant 0 : i32
    %c0_i32_1 = arith.constant 0 : i32
    return %c0_i32, %c0_i32_0 : i32, i32
  }
  func.func @transform_7(%arg0: i32) -> (i32, i32) {
    %c0_i32 = arith.constant 0 : i32
    %c0_i32_0 = arith.constant 0 : i32
    return %c0_i32, %arg0 : i32, i32
  }
}

</mosaic_0001>

<llo_original>
// kernel: tpu_custom_call.1
$region0: #{tpu_custom_call.1}
  #allocation0 [shape = 'u32[]', space=smem, size = 0x4, offset = 0x4, fixed_abs, tag = 'smem constant byte address 0x4 - core index']
  #allocation1 [shape = 'u32[144,128]{1,0:T(1,128)}', space=vmem, size = 0x12000, scoped, tag = 'internal scratch']
  %s0 = inlined_call_operand.vmem [shape: f32[2,8], index: 0, kind: input, shape index: {}]
  %s1 = inlined_call_operand.vmem [shape: f32[32,2], index: 1, kind: input, shape index: {}]
  %s2 = inlined_call_operand.vmem [shape: f32[32,1], index: 2, kind: input, shape index: {}]
  %s3 = inlined_call_operand.vmem [shape: f32[32,32], index: 3, kind: input, shape index: {}]
  %s4 = inlined_call_operand.vmem [shape: f32[32,1], index: 4, kind: input, shape index: {}]
  %s5 = inlined_call_operand.vmem [shape: f32[4,32], index: 5, kind: input, shape index: {}]
  %s6 = inlined_call_operand.vmem [shape: f32[4,1], index: 6, kind: input, shape index: {}]
  %s7 = inlined_call_operand.hbm [shape: f32[4,8], index: 7, kind: output, shape index: {}]
  %s8 = sld [smem:[#allocation0]]
  $region38: #{tpu_custom_call.1} parent=0
    _
  %s10 = ssub.s32 1, %s8
  %s11 = scalar_select 0, %s10, %s8
  $region1: #{tpu_custom_call.1} parent=0
    #allocation2 [shape = 'u8[2048]{0}', space=vmem, size = 0x800, scoped, tag = 'output window, operand 0, single buffered']
    #allocation3 [shape = 's32[1]{0}', space=sflag, size = 0x4, scoped, tag = 'scoped memory for tpu_custom_call.1']
    %12 = vsyncpa [#allocation3], 0
    // Predicated region
    $region2: #{tpu_custom_call.1} parent=1 // pred_check
      _
    $region3: #{tpu_custom_call.1} parent=1 // pred_check_branch
      %14 = sbr.rel (0) target = $region5
    $region4: #{tpu_custom_call.1} parent=1 // pred_region
      _
    $region5: #{tpu_custom_call.1} parent=1 // pred_fallthru
      _
    // Predicated region
    $region6: #{tpu_custom_call.1} parent=1 // pred_check
      _
    $region7: #{tpu_custom_call.1} parent=1 // pred_check_branch
      %16 = sbr.rel (0) target = $region9
    $region8: #{tpu_custom_call.1} parent=1 // pred_region
      _
    $region9: #{tpu_custom_call.1} parent=1 // pred_fallthru
      _
    // Predicated region
    $region10: #{tpu_custom_call.1} parent=1 // pred_check
      _
    $region11: #{tpu_custom_call.1} parent=1 // pred_check_branch
      %18 = sbr.rel (0) target = $region13
    $region12: #{tpu_custom_call.1} parent=1 // pred_region
      _
    $region13: #{tpu_custom_call.1} parent=1 // pred_fallthru
      _
    // Predicated region
    $region14: #{tpu_custom_call.1} parent=1 // pred_check
      _
    $region15: #{tpu_custom_call.1} parent=1 // pred_check_branch
      %20 = sbr.rel (0) target = $region17
    $region16: #{tpu_custom_call.1} parent=1 // pred_region
      _
    $region17: #{tpu_custom_call.1} parent=1 // pred_fallthru
      _
    // Predicated region
    $region18: #{tpu_custom_call.1} parent=1 // pred_check
      _
    $region19: #{tpu_custom_call.1} parent=1 // pred_check_branch
      %22 = sbr.rel (0) target = $region21
    $region20: #{tpu_custom_call.1} parent=1 // pred_region
      _
    $region21: #{tpu_custom_call.1} parent=1 // pred_fallthru
      _
    // Predicated region
    $region22: #{tpu_custom_call.1} parent=1 // pred_check
      _
    $region23: #{tpu_custom_call.1} parent=1 // pred_check_branch
      %24 = sbr.rel (0) target = $region25
    $region24: #{tpu_custom_call.1} parent=1 // pred_region
      _
    $region25: #{tpu_custom_call.1} parent=1 // pred_fallthru
      _
    // Predicated region
    $region26: #{tpu_custom_call.1} parent=1 // pred_check
      _
    $region27: #{tpu_custom_call.1} parent=1 // pred_check_branch
      %26 = sbr.rel (0) target = $region29
    $region28: #{tpu_custom_call.1} parent=1 // pred_region
      _
    $region29: #{tpu_custom_call.1} parent=1 // pred_fallthru
      _
    %v27 = vld [vmem:[%s0] sm:$0x3]
    %v28 = vld [vmem:[%s1] sm:$0xff]
    %v29 = vld [vmem:[%s1 + $0x8] sm:$0xff]
    %v30 = vld [vmem:[%s1 + $0x10] sm:$0xff]
    %v31 = vld [vmem:[%s1 + $0x18] sm:$0xff]
    %33 = vset.pattern.permute.xlu0 0
    %34 = vperm.xlu0 %33, %v28
    %v35 = vpop.permute.xlu0 %34
    %38 = vset.pattern.permute.xlu0 0
    %39 = vperm.xlu0 %38, %v29
    %v40 = vpop.permute.xlu0 %39
    %43 = vset.pattern.permute.xlu0 0
    %44 = vperm.xlu0 %43, %v30
    %v45 = vpop.permute.xlu0 %44
    %48 = vset.pattern.permute.xlu0 0
    %49 = vperm.xlu0 %48, %v31
    %v50 = vpop.permute.xlu0 %49
    %v52 = vlaneseq
    %v53 = vshrl.u32 %v52, 7
    %v54 = vsub.s32 0, %v53
    %v55 = vrot.slane %v27, %v54
    %v56 = vmul.f32 %v35, %v55
    %v57 = vmul.f32 %v40, %v55
    %v58 = vmul.f32 %v45, %v55
    %v59 = vmul.f32 %v50, %v55
    %v60 = vadd.f32 %v56, 0.0
    %v61 = vadd.f32 %v57, 0.0
    %v62 = vadd.f32 %v58, 0.0
    %v63 = vadd.f32 %v59, 0.0
    %64 = vset.pattern.permute.xlu0 1
    %65 = vperm.xlu0 %64, %v28
    %v66 = vpop.permute.xlu0 %65
    %68 = vset.pattern.permute.xlu0 1
    %69 = vperm.xlu0 %68, %v29
    %v70 = vpop.permute.xlu0 %69
    %72 = vset.pattern.permute.xlu0 1
    %73 = vperm.xlu0 %72, %v30
    %v74 = vpop.permute.xlu0 %73
    %76 = vset.pattern.permute.xlu0 1
    %77 = vperm.xlu0 %76, %v31
    %v78 = vpop.permute.xlu0 %77
    %v80 = vlaneseq
    %v81 = vshrl.u32 %v80, 7
    %v82 = vsub.s32 1, %v81
    %v83 = vrot.slane %v27, %v82
    %v84 = vmul.f32 %v66, %v83
    %v85 = vmul.f32 %v70, %v83
    %v86 = vmul.f32 %v74, %v83
    %v87 = vmul.f32 %v78, %v83
    %v88 = vadd.f32 %v60, %v84
    %v89 = vadd.f32 %v61, %v85
    %v90 = vadd.f32 %v62, %v86
    %v91 = vadd.f32 %v63, %v87
    %v92 = vld [vmem:[%s2] sm:$0xff]
    %v93 = vld [vmem:[%s2 + $0x8] sm:$0xff]
    %v94 = vld [vmem:[%s2 + $0x10] sm:$0xff]
    %v95 = vld [vmem:[%s2 + $0x18] sm:$0xff]
    %97 = vset.pattern.permute.xlu0 0
    %98 = vperm.xlu0 %97, %v92
    %v99 = vpop.permute.xlu0 %98
    %102 = vset.pattern.permute.xlu0 0
    %103 = vperm.xlu0 %102, %v93
    %v104 = vpop.permute.xlu0 %103
    %107 = vset.pattern.permute.xlu0 0
    %108 = vperm.xlu0 %107, %v94
    %v109 = vpop.permute.xlu0 %108
    %112 = vset.pattern.permute.xlu0 0
    %113 = vperm.xlu0 %112, %v95
    %v114 = vpop.permute.xlu0 %113
    %v116 = vadd.f32 %v88, %v99
    %v117 = vadd.f32 %v89, %v104
    %v118 = vadd.f32 %v90, %v109
    %v119 = vadd.f32 %v91, %v114
    %v120 = vmax.f32 %v116, 0.0
    %v121 = vmax.f32 %v117, 0.0
    %v122 = vmax.f32 %v118, 0.0
    %v123 = vmax.f32 %v119, 0.0
    %v124 = vld [vmem:[%s3] sm:$0xff]
    %v125 = vld [vmem:[%s3 + $0x8] sm:$0xff]
    %v126 = vld [vmem:[%s3 + $0x10] sm:$0xff]
    %v127 = vld [vmem:[%s3 + $0x18] sm:$0xff]
    %v128 = vld [vmem:[%s4] sm:$0xff]
    %v129 = vld [vmem:[%s4 + $0x8] sm:$0xff]
    %v130 = vld [vmem:[%s4 + $0x10] sm:$0xff]
    %v131 = vld [vmem:[%s4 + $0x18] sm:$0xff]
    %133 = vset.pattern.permute.xlu0 0
    %134 = vperm.xlu0 %133, %v128
    %v135 = vpop.permute.xlu0 %134
    %138 = vset.pattern.permute.xlu0 0
    %139 = vperm.xlu0 %138, %v129
    %v140 = vpop.permute.xlu0 %139
    %143 = vset.pattern.permute.xlu0 0
    %144 = vperm.xlu0 %143, %v130
    %v145 = vpop.permute.xlu0 %144
    %148 = vset.pattern.permute.xlu0 0
    %149 = vperm.xlu0 %148, %v131
    %v150 = vpop.permute.xlu0 %149
    %vm152 = vcmask 261120
    %v154 = vsel %vm152, %v124, 0
    %v157 = vsel %vm152, %v125, 0
    %v160 = vsel %vm152, %v126, 0
    %v163 = vsel %vm152, %v127, 0
    %165 = vmatprep.subr.mxu0 0.0
    %166 = vmatpush1.msra.mxu0 %v120
    %167 = vmatprep.subr.mxu0 0.0
    %168 = vmatpush1.msra.mxu0 %v121
    %169 = vmatprep.subr.mxu0 0.0
    %170 = vmatpush1.msra.mxu0 %v122
    %171 = vmatprep.subr.mxu0 0.0
    %172 = vmatpush1.msra.mxu0 %v123
    %173 = vmatprep.subr.mxu0 0.0
    %174 = vmatpush1.msra.mxu0 0.0
    %175 = vmatprep.subr.mxu0 0.0
    %176 = vmatpush1.msra.mxu0 0.0
    %177 = vmatprep.subr.mxu0 0.0
    %178 = vmatpush1.msra.mxu0 0.0
    %179 = vmatprep.subr.mxu0 0.0
    %180 = vmatpush1.msra.mxu0 0.0
    %181 = vmatprep.subr.mxu0 0.0
    %182 = vmatpush1.msra.mxu0 0.0
    %183 = vmatprep.subr.mxu0 0.0
    %184 = vmatpush1.msra.mxu0 0.0
    %185 = vmatprep.subr.mxu0 0.0
    %186 = vmatpush1.msra.mxu0 0.0
    %187 = vmatprep.subr.mxu0 0.0
    %188 = vmatpush1.msra.mxu0 0.0
    %189 = vmatprep.subr.mxu0 0.0
    %190 = vmatpush1.msra.mxu0 0.0
    %191 = vmatprep.subr.mxu0 0.0
    %192 = vmatpush1.msra.mxu0 0.0
    %193 = vmatprep.subr.mxu0 0.0
    %194 = vmatpush1.msra.mxu0 0.0
    %195 = vmatprep.subr.mxu0 0.0
    %196 = vmatpush1.msra.mxu0 0.0
    %197 = vmatprep.subr.mxu0 0.0
    %198 = vmatpush1.msra.mxu0 0.0
    %199 = vmatprep.subr.mxu0 0.0
    %200 = vmatpush1.msra.mxu0 0.0
    %201 = vmatprep.subr.mxu0 0.0
    %202 = vmatpush1.msra.mxu0 0.0
    %203 = vmatprep.subr.mxu0 0.0
    %204 = vmatpush1.msra.mxu0 0.0
    %205 = vmatprep.subr.mxu0 0.0
    %206 = vmatpush1.msra.mxu0 0.0
    %207 = vmatprep.subr.mxu0 0.0
    %208 = vmatpush1.msra.mxu0 0.0
    %209 = vmatprep.subr.mxu0 0.0
    %210 = vmatpush1.msra.mxu0 0.0
    %211 = vmatprep.subr.mxu0 0.0
    %212 = vmatpush1.msra.mxu0 0.0
    %213 = vmatprep.subr.mxu0 0.0
    %214 = vmatpush1.msra.mxu0 0.0
    %215 = vmatprep.subr.mxu0 0.0
    %216 = vmatpush1.msra.mxu0 0.0
    %217 = vmatprep.subr.mxu0 0.0
    %218 = vmatpush1.msra.mxu0 0.0
    %219 = vmatprep.subr.mxu0 0.0
    %220 = vmatpush1.msra.mxu0 0.0
    %221 = vmatprep.subr.mxu0 0.0
    %222 = vmatpush1.msra.mxu0 0.0
    %223 = vmatprep.subr.mxu0 0.0
    %224 = vmatpush1.msra.mxu0 0.0
    %225 = vmatprep.subr.mxu0 0.0
    %226 = vmatpush1.msra.mxu0 0.0
    %227 = vmatprep.subr.mxu0 0.0
    %228 = vmatpush1.msra.mxu0 0.0
    %229 = vmatprep.mubr.f32.mxu0 0.0
    %230 = vmatmul.mubr.f32.gmra.mrb[0].mxu0 %v154
    %v231 = vpop.f32.mrb[0].mxu0
    %v232 = vadd.f32 %v135, %v231
    %v233 = vpop.f32.mrb[0].mxu0
    %234 = vmatprep.mubr.f32.mxu0 0.0
    %235 = vmatmul.mubr.f32.gmra.mrb[0].mxu0 %v157
    %v236 = vpop.f32.mrb[0].mxu0
    %v237 = vadd.f32 %v140, %v236
    %v238 = vpop.f32.mrb[0].mxu0
    %239 = vmatprep.mubr.f32.mxu0 0.0
    %240 = vmatmul.mubr.f32.gmra.mrb[0].mxu0 %v160
    %v241 = vpop.f32.mrb[0].mxu0
    %v242 = vadd.f32 %v145, %v241
    %v243 = vpop.f32.mrb[0].mxu0
    %244 = vmatprep.mubr.f32.mxu0 0.0
    %245 = vmatmul.mubr.f32.gmra.mrb[0].mxu0 %v163
    %v246 = vpop.f32.mrb[0].mxu0
    %v247 = vadd.f32 %v150, %v246
    %v248 = vpop.f32.mrb[0].mxu0
    %249 = vdwg.mxu0
    %v250 = vmax.f32 %v232, 0.0
    %v251 = vmax.f32 %v237, 0.0
    %v252 = vmax.f32 %v242, 0.0
    %v253 = vmax.f32 %v247, 0.0
    %v254 = vld [vmem:[%s5] sm:$0xf]
    %v255 = vld [vmem:[%s6] sm:$0xf]
    %257 = vset.pattern.permute.xlu0 0
    %258 = vperm.xlu0 %257, %v255
    %v259 = vpop.permute.xlu0 %258
    %v262 = vsel %vm152, %v254, 0
    %264 = vmatprep.subr.mxu0 0.0
    %265 = vmatpush1.msra.mxu0 %v250
    %266 = vmatprep.subr.mxu0 0.0
    %267 = vmatpush1.msra.mxu0 %v251
    %268 = vmatprep.subr.mxu0 0.0
    %269 = vmatpush1.msra.mxu0 %v252
    %270 = vmatprep.subr.mxu0 0.0
    %271 = vmatpush1.msra.mxu0 %v253
    %272 = vmatprep.subr.mxu0 0.0
    %273 = vmatpush1.msra.mxu0 0.0
    %274 = vmatprep.subr.mxu0 0.0
    %275 = vmatpush1.msra.mxu0 0.0
    %276 = vmatprep.subr.mxu0 0.0
    %277 = vmatpush1.msra.mxu0 0.0
    %278 = vmatprep.subr.mxu0 0.0
    %279 = vmatpush1.msra.mxu0 0.0
    %280 = vmatprep.subr.mxu0 0.0
    %281 = vmatpush1.msra.mxu0 0.0
    %282 = vmatprep.subr.mxu0 0.0
    %283 = vmatpush1.msra.mxu0 0.0
    %284 = vmatprep.subr.mxu0 0.0
    %285 = vmatpush1.msra.mxu0 0.0
    %286 = vmatprep.subr.mxu0 0.0
    %287 = vmatpush1.msra.mxu0 0.0
    %288 = vmatprep.subr.mxu0 0.0
    %289 = vmatpush1.msra.mxu0 0.0
    %290 = vmatprep.subr.mxu0 0.0
    %291 = vmatpush1.msra.mxu0 0.0
    %292 = vmatprep.subr.mxu0 0.0
    %293 = vmatpush1.msra.mxu0 0.0
    %294 = vmatprep.subr.mxu0 0.0
    %295 = vmatpush1.msra.mxu0 0.0
    %296 = vmatprep.subr.mxu0 0.0
    %297 = vmatpush1.msra.mxu0 0.0
    %298 = vmatprep.subr.mxu0 0.0
    %299 = vmatpush1.msra.mxu0 0.0
    %300 = vmatprep.subr.mxu0 0.0
    %301 = vmatpush1.msra.mxu0 0.0
    %302 = vmatprep.subr.mxu0 0.0
    %303 = vmatpush1.msra.mxu0 0.0
    %304 = vmatprep.subr.mxu0 0.0
    %305 = vmatpush1.msra.mxu0 0.0
    %306 = vmatprep.subr.mxu0 0.0
    %307 = vmatpush1.msra.mxu0 0.0
    %308 = vmatprep.subr.mxu0 0.0
    %309 = vmatpush1.msra.mxu0 0.0
    %310 = vmatprep.subr.mxu0 0.0
    %311 = vmatpush1.msra.mxu0 0.0
    %312 = vmatprep.subr.mxu0 0.0
    %313 = vmatpush1.msra.mxu0 0.0
    %314 = vmatprep.subr.mxu0 0.0
    %315 = vmatpush1.msra.mxu0 0.0
    %316 = vmatprep.subr.mxu0 0.0
    %317 = vmatpush1.msra.mxu0 0.0
    %318 = vmatprep.subr.mxu0 0.0
    %319 = vmatpush1.msra.mxu0 0.0
    %320 = vmatprep.subr.mxu0 0.0
    %321 = vmatpush1.msra.mxu0 0.0
    %322 = vmatprep.subr.mxu0 0.0
    %323 = vmatpush1.msra.mxu0 0.0
    %324 = vmatprep.subr.mxu0 0.0
    %325 = vmatpush1.msra.mxu0 0.0
    %326 = vmatprep.subr.mxu0 0.0
    %327 = vmatpush1.msra.mxu0 0.0
    %328 = vmatprep.mubr.f32.mxu0 0.0
    %329 = vmatmul.mubr.f32.gmra.mrb[0].mxu0 %v262
    %v330 = vpop.f32.mrb[0].mxu0
    %v331 = vadd.f32 %v259, %v330
    %v332 = vpop.f32.mrb[0].mxu0
    %333 = vdwg.mxu0
    %vm334 = vcmask 60416
    %v335 = vsel %vm334, %v331, -inf
    %v336 = vrot.slane %v335, 4
    %v337 = vmax.f32 %v335, %v336
    %v338 = vrot.slane %v337, 2
    %v339 = vmax.f32 %v337, %v338
    %v340 = vrot.slane %v339, 1
    %v341 = vmax.f32 %v339, %v340
    %v342 = vsub.f32 %v331, %v341
    %v343 = vmul.f32 %v342, 1.442695
    %v344 = vpow.pop %v343
    %v345 = vsel %vm334, %v344, 0.0
    %v346 = vrot.slane %v345, 4
    %v347 = vadd.f32 %v345, %v346
    %v348 = vrot.slane %v347, 2
    %v349 = vadd.f32 %v347, %v348
    %v350 = vrot.slane %v349, 1
    %v351 = vadd.f32 %v349, %v350
    %v352 = vlog2.pop %v351
    %v353 = vmul.f32 %v352, 0.6931472
    %v354 = vsub.f32 %v342, %v353
    %355 = vst.msk [vmem:[#allocation2] sm:$0xf] %vm334, %v354
    // Predicated region
    $region30: #{tpu_custom_call.1} parent=1 // pred_check
      _
    $region31: #{tpu_custom_call.1} parent=1 // pred_check_branch
      %357 = sbr.rel (0) target = $region33
    $region32: #{tpu_custom_call.1} parent=1 // pred_region
      %s359 = ssub.s32 64, 64
      %360 = vsyncadd [#allocation3], %s359
      %s362 = sshll.u32 [#allocation2], 4
      %s363 = int_to_ptr.vmem [resolvable:$true] %s362
      %365 = dma.vmem_to_hbm [thread:$0]  %s363, 64, %s7, [#allocation3]
    $region33: #{tpu_custom_call.1} parent=1 // pred_fallthru
      _
    // Predicated region
    $region34: #{tpu_custom_call.1} parent=1 // pred_check
      _
    $region35: #{tpu_custom_call.1} parent=1 // pred_check_branch
      %367 = sbr.rel (0) target = $region37
    $region36: #{tpu_custom_call.1} parent=1 // pred_region
      %368 = dma.done [#allocation3], 64
    $region37: #{tpu_custom_call.1} parent=1 // pred_fallthru
      _
    %369 = vsyncpa [#allocation3], 1

</llo_original>
